<compile_context>
chip_gen: v7x
topology: tpu7x:2x2x1
jax: 0.10.0
libtpu: 0.0.40
codegen_flags: <defaults>
</compile_context>

<pallas_src>
import jax
import jax.numpy as jnp
from jax.experimental import pallas as pl
from jax.experimental.pallas import tpu as pltpu

_LANE = 128
_SUBLANE = 8
_TILE_BYTE_BUDGET = 2 * 1024 * 1024          # per x tile; 2 in-bufs + 2 out-bufs ~ 8 MiB
_VMEM_LIMIT = 32 * 1024 * 1024               # safe on v5e/v6e/v7x


def _round_up(v, m):
    return (v + m - 1) // m * m


def _pick_tiles(rows, cols, itemsize):
    """Pick (row_tile, col_tile) so one x tile is <= ~_TILE_BYTE_BUDGET.

    Constraints: col_tile == cols (full extent) or a multiple of 128;
    row_tile is a multiple of 8.  Ragged edges are handled by pl.cdiv grids
    (padded reads / dropped pad writes are fine for an elementwise add).
    """
    row_cap = _round_up(rows, _SUBLANE)
    if cols * itemsize * _SUBLANE <= _TILE_BYTE_BUDGET:
        tc = cols                                            # full lane extent (always legal)
        tr = _TILE_BYTE_BUDGET // max(1, cols * itemsize)
        tr = max(_SUBLANE, (tr // _SUBLANE) * _SUBLANE)
        tr = min(tr, row_cap)
    else:
        tc = (_TILE_BYTE_BUDGET // (_SUBLANE * itemsize)) // _LANE * _LANE
        tc = max(_LANE, min(tc, _round_up(cols, _LANE)))     # multiple of 128
        tr = _SUBLANE
    return tr, tc


def _add_bias_kernel(x_ref, b_ref, o_ref):
    # b_ref is either (1, TF) (broadcast over sublanes) or (TR, 1) (broadcast over lanes)
    o_ref[...] = x_ref[...] + b_ref[...]


def _pallas_add(x2d, bias2d, bias_is_row):
    """x2d: (R, C); bias2d: (1, C) if bias_is_row else (R, 1)."""
    R, C = x2d.shape
    itemsize = jnp.dtype(x2d.dtype).itemsize
    tr, tc = _pick_tiles(R, C, itemsize)
    grid = (pl.cdiv(R, tr), pl.cdiv(C, tc))

    if bias_is_row:
        b_spec = pl.BlockSpec((1, tc), lambda i, j: (0, j))
    else:
        b_spec = pl.BlockSpec((tr, 1), lambda i, j: (i, 0))

    # NOTE: input_output_aliases={0: 0} would let callers donate x's buffer, but it
    # forces an extra copy when x is not donatable, so it is intentionally omitted.
    return pl.pallas_call(
        _add_bias_kernel,
        out_shape=jax.ShapeDtypeStruct((R, C), x2d.dtype),
        grid_spec=pl.GridSpec(
            grid=grid,
            in_specs=[
                pl.BlockSpec((tr, tc), lambda i, j: (i, j)),
                b_spec,
            ],
            out_specs=pl.BlockSpec((tr, tc), lambda i, j: (i, j)),
        ),
        compiler_params=pltpu.CompilerParams(
            dimension_semantics=("parallel", "parallel"),
            vmem_limit_bytes=_VMEM_LIMIT,
        ),
        cost_estimate=pl.CostEstimate(
            flops=R * C,
            transcendentals=0,
            bytes_accessed=2 * R * C * itemsize
            + bias2d.size * jnp.dtype(bias2d.dtype).itemsize,
        ),
    )(x2d, bias2d)


class AddBias:
    """JAX/Pallas port of the PyTorch AddBias module."""

    def __init__(self, bias):
        # mimics nn.Parameter(bias.unsqueeze(1)) -> stored as (F, 1)
        self._bias = jnp.asarray(bias).reshape(-1, 1)

    def __call__(self, x):
        bias = self._bias[:, 0]
        if x.ndim == 2:
            B, F = x.shape
            b_row = bias.reshape(1, F).astype(x.dtype)
            if F < _LANE:
                # lane axis would be <128 (masked stores, launch overhead >> work)
                return x + b_row
            return _pallas_add(x, b_row, bias_is_row=True)
        else:
            # NCHW, per-channel bias broadcast over N, H, W
            N, C, H, W = x.shape
            L = H * W
            if L < _LANE:
                return x + bias.reshape(1, C, 1, 1).astype(x.dtype)
            # lane-dense layout: rows = (n, c) pairs, lanes = H*W
            x2 = x.reshape(N * C, L)
            b_col = jnp.tile(bias.astype(x.dtype), N).reshape(N * C, 1)
            y2 = _pallas_add(x2, b_col, bias_is_row=False)
            return y2.reshape(N, C, H, W)


if __name__ == "__main__":
    key = jax.random.PRNGKey(0)
    k1, k2, k3, k4 = jax.random.split(key, 4)

    # ---- 4-D NCHW path (Pallas kernel; lane axis = H*W = 256) ----
    C = 4
    bias_c = jax.random.normal(k1, (C,), dtype=jnp.float32)
    mod_c = AddBias(bias_c)
    x4 = jax.random.normal(k2, (2, C, 16, 16), dtype=jnp.float32)
    y4 = jax.block_until_ready(mod_c(x4))
    ref4 = x4 + bias_c.reshape(1, C, 1, 1)
    assert jnp.allclose(y4, ref4, atol=1e-6), "4D mismatch"

    # ---- 2-D path with lane-dense F (Pallas kernel) ----
    F = 256
    bias_f = jax.random.normal(k3, (F,), dtype=jnp.float32)
    mod_f = AddBias(bias_f)
    x2 = jax.random.normal(k4, (8, F), dtype=jnp.float32)
    y2 = jax.block_until_ready(mod_f(x2))
    ref2 = x2 + bias_f.reshape(1, F)
    assert jnp.allclose(y2, ref2, atol=1e-6), "2D mismatch"

    # ---- tiny 2-D case (F < 128): jnp fallback path ----
    x2s = jax.random.normal(k2, (8, C), dtype=jnp.float32)
    y2s = jax.block_until_ready(mod_c(x2s))
    assert jnp.allclose(y2s, x2s + bias_c.reshape(1, C), atol=1e-6), "2D small mismatch"

    print("KERNEL_OK")
</pallas_src>

<mosaic_0001>
module attributes {stable_mosaic.version = 11 : i64} {
  func.func @_add_bias_kernel(%arg0: i32, %arg1: i32, %arg2: memref<8x256xf32, #tpu.memory_space<vmem>>, %arg3: memref<8x1xf32, #tpu.memory_space<vmem>>, %arg4: memref<8x256xf32, #tpu.memory_space<vmem>>) attributes {dimension_semantics = [#tpu.dimension_semantics<parallel>, #tpu.dimension_semantics<parallel>], iteration_bounds = array<i64: 1, 1>, scalar_prefetch = 0 : i64, scratch_operands = 0 : i64, tpu.core_type = #tpu.core_type<tc>, window_params = [{transform_indices = @transform_0, window_bounds = array<i64: 8, 256>}, {transform_indices = @transform_1, window_bounds = array<i64: 8, 1>}, {transform_indices = @transform_2, window_bounds = array<i64: 8, 256>}]} {
    %c0 = arith.constant 0 : index
    %c0_0 = arith.constant 0 : index
    %0 = vector.load %arg2[%c0, %c0_0] : memref<8x256xf32, #tpu.memory_space<vmem>>, vector<8x256xf32>
    %c0_1 = arith.constant 0 : index
    %c0_2 = arith.constant 0 : index
    %1 = vector.load %arg3[%c0_1, %c0_2] : memref<8x1xf32, #tpu.memory_space<vmem>>, vector<8x1xf32>
    %2 = vector.broadcast %1 : vector<8x1xf32> to vector<8x256xf32>
    %3 = arith.addf %0, %2 : vector<8x256xf32>
    %c0_3 = arith.constant 0 : index
    %c0_4 = arith.constant 0 : index
    %4 = vector.load %arg4[%c0_3, %c0_4] : memref<8x256xf32, #tpu.memory_space<vmem>>, vector<8x256xf32>
    tpu.vector_store %arg4[%c0_3, %c0_4], %3 {strides = array<i32>} : memref<8x256xf32, #tpu.memory_space<vmem>>, vector<8x256xf32>,
    return
  }
  func.func @transform_0(%arg0: i32, %arg1: i32) -> (i32, i32) {
    %c0_i32 = arith.constant 0 : i32
    return %arg0, %arg1 : i32, i32
  }
  func.func @transform_1(%arg0: i32, %arg1: i32) -> (i32, i32) {
    %c0_i32 = arith.constant 0 : i32
    %c0_i32_0 = arith.constant 0 : i32
    return %arg0, %c0_i32 : i32, i32
  }
  func.func @transform_2(%arg0: i32, %arg1: i32) -> (i32, i32) {
    %c0_i32 = arith.constant 0 : i32
    return %arg0, %arg1 : i32, i32
  }
}

</mosaic_0001>

<llo_original>
// kernel: tpu_custom_call.1
$region0: #{tpu_custom_call.1}
  #allocation0 [shape = 'u32[]', space=smem, size = 0x4, offset = 0x4, fixed_abs, tag = 'smem constant byte address 0x4 - core index']
  #allocation1 [shape = 'u32[144,128]{1,0:T(1,128)}', space=vmem, size = 0x12000, scoped, tag = 'internal scratch']
  %s0 = inlined_call_operand.hbm [shape: f32[8,256], index: 0, kind: input, shape index: {}]
  %s1 = inlined_call_operand.vmem [shape: f32[8,1], index: 1, kind: input, shape index: {}]
  %s2 = inlined_call_operand.hbm [shape: f32[8,256], index: 2, kind: output, shape index: {}]
  %s3 = sld [smem:[#allocation0]]
  $region22: #{tpu_custom_call.1} parent=0
    _
  %s5 = ssub.s32 1, %s3
  %s6 = scalar_select 0, %s5, %s3
  $region1: #{tpu_custom_call.1} parent=0
    #allocation2 [shape = 'u8[8192]{0}', space=vmem, size = 0x2000, scoped, tag = 'input window, operand 0, single buffered']
    #allocation3 [shape = 's32[1]{0}', space=sflag, size = 0x4, scoped, tag = 'scoped memory for tpu_custom_call.1']
    #allocation4 [shape = 's32[1]{0}', space=sflag, size = 0x4, scoped, tag = 'scoped memory for tpu_custom_call.1']
    #allocation5 [shape = 'u8[8192]{0}', space=vmem, size = 0x2000, scoped, tag = 'output window, operand 0, single buffered']
    %7 = vsyncpa [#allocation3], 0
    %8 = vsyncpa [#allocation4], 0
    // Predicated region
    $region2: #{tpu_custom_call.1} parent=1 // pred_check
      _
    $region3: #{tpu_custom_call.1} parent=1 // pred_check_branch
      %10 = sbr.rel (0) target = $region5
    $region4: #{tpu_custom_call.1} parent=1 // pred_region
      %s12 = ssub.s32 256, 256
      %13 = vsyncadd [#allocation3], %s12
      %s15 = sshll.u32 [#allocation2], 4
      %s16 = int_to_ptr.vmem [resolvable:$true] %s15
      %18 = dma.hbm_to_vmem [thread:$0]  %s0, 256, %s16, [#allocation3]
    $region5: #{tpu_custom_call.1} parent=1 // pred_fallthru
      _
    // Predicated region
    $region6: #{tpu_custom_call.1} parent=1 // pred_check
      _
    $region7: #{tpu_custom_call.1} parent=1 // pred_check_branch
      %20 = sbr.rel (0) target = $region9
    $region8: #{tpu_custom_call.1} parent=1 // pred_region
      _
    $region9: #{tpu_custom_call.1} parent=1 // pred_fallthru
      _
    // Predicated region
    $region10: #{tpu_custom_call.1} parent=1 // pred_check
      _
    $region11: #{tpu_custom_call.1} parent=1 // pred_check_branch
      %22 = sbr.rel (0) target = $region13
    $region12: #{tpu_custom_call.1} parent=1 // pred_region
      %23 = dma.done [#allocation3], 256
    $region13: #{tpu_custom_call.1} parent=1 // pred_fallthru
      _
    %v24 = vld [vmem:[#allocation2] sm:$0xff]
    %v25 = vld [vmem:[#allocation2 + $0x8] sm:$0xff]
    %v26 = vld [vmem:[%s1] sm:$0xff]
    %28 = vset.pattern.permute.xlu0 0
    %29 = vperm.xlu0 %28, %v26
    %v30 = vpop.permute.xlu0 %29
    %v32 = vadd.f32 %v24, %v30
    %v33 = vadd.f32 %v25, %v30
    %34 = vst [vmem:[#allocation5] sm:$0xff] %v32
    %35 = vst [vmem:[#allocation5 + $0x8] sm:$0xff] %v33
    // Predicated region
    $region14: #{tpu_custom_call.1} parent=1 // pred_check
      _
    $region15: #{tpu_custom_call.1} parent=1 // pred_check_branch
      %37 = sbr.rel (0) target = $region17
    $region16: #{tpu_custom_call.1} parent=1 // pred_region
      %s39 = ssub.s32 256, 256
      %40 = vsyncadd [#allocation4], %s39
      %s42 = sshll.u32 [#allocation5], 4
      %s43 = int_to_ptr.vmem [resolvable:$true] %s42
      %45 = dma.vmem_to_hbm [thread:$0]  %s43, 256, %s2, [#allocation4]
    $region17: #{tpu_custom_call.1} parent=1 // pred_fallthru
      _
    // Predicated region
    $region18: #{tpu_custom_call.1} parent=1 // pred_check
      _
    $region19: #{tpu_custom_call.1} parent=1 // pred_check_branch
      %47 = sbr.rel (0) target = $region21
    $region20: #{tpu_custom_call.1} parent=1 // pred_region
      %48 = dma.done [#allocation4], 256
    $region21: #{tpu_custom_call.1} parent=1 // pred_fallthru
      _
    %49 = vsyncpa [#allocation3], 1
    %50 = vsyncpa [#allocation4], 1

</llo_original>
